<compile_context>
chip_gen: v5e
topology: v5e:2x2
jax: 0.10.0
libtpu: 0.0.40
codegen_flags: <defaults>
</compile_context>

<pallas_src>
import functools

import jax
import jax.numpy as jnp
import numpy as np
from jax import lax
from jax.experimental import pallas as pl
from jax.experimental.pallas import tpu as pltpu


def _conv_transpose1d_kernel(x_ref, w_ref, b_ref, o_ref, *, K, pad, L, L_out,
                             chunk, interior_run):
    """One batch tile of conv_transpose1d (stride=1) + bias, NCL layout.

    x_ref : (B_TILE, C_in, L)      input block (length on lanes)
    w_ref : (K, C_out, C_in)       flipped taps
    b_ref : (C_out, 1)             bias, broadcast over length (lanes)
    o_ref : (B_TILE, C_out, L_out) output block (length on lanes)
    """
    B_TILE = x_ref.shape[0]
    C_in = x_ref.shape[1]
    C_out = o_ref.shape[1]
    bias = b_ref[...]                       # (C_out, 1) -> broadcasts over lanes
    n_chunks = -(-L_out // chunk)
    lo_int, hi_int = interior_run           # static run of "interior" chunks

    def edge_chunk(b, c0, width):
        """Handles any chunk with fully static indices: each tap's x slice is
        clipped to [0, L) and the missing edge columns are zero-filled
        in-register (this replaces the old padded VMEM scratch)."""
        acc = jnp.zeros((C_out, width), jnp.float32)
        for k in range(K):
            s = c0 + k - pad                # first x column needed by tap k
            lo = max(0, s)
            hi = min(L, s + width)
            if hi <= lo:
                continue                    # tap entirely outside the input
            xs = x_ref[b, :, lo:hi]         # (C_in, hi - lo)
            left, right = lo - s, (s + width) - hi
            if left or right:
                parts = []
                if left:
                    parts.append(jnp.zeros((C_in, left), xs.dtype))
                parts.append(xs)
                if right:
                    parts.append(jnp.zeros((C_in, right), xs.dtype))
                xs = jnp.concatenate(parts, axis=-1)
            acc = acc + jnp.dot(w_ref[k], xs, preferred_element_type=jnp.float32)
        o_ref[b, :, c0:c0 + width] = (acc + bias).astype(o_ref.dtype)

    for b in range(B_TILE):                 # static unroll; B_TILE is capped
        # Edge / ragged chunks: static code with clipping + zero fill.
        for ci in list(range(0, lo_int)) + list(range(hi_int, n_chunks)):
            c0 = ci * chunk
            edge_chunk(b, c0, min(chunk, L_out - c0))

        # Interior chunks: every tap reads a full in-range slice, every store
        # is a full 128-aligned chunk.  Loop at runtime when there are many so
        # long sequences do not blow up the unrolled program.
        n_int = hi_int - lo_int
        if n_int > 0:
            if n_int <= 8:
                for ci in range(lo_int, hi_int):
                    edge_chunk(b, ci * chunk, chunk)
            else:
                def interior_chunk(ci, carry, b=b):
                    c0 = pl.multiple_of(ci * chunk, chunk)
                    acc = jnp.zeros((C_out, chunk), jnp.float32)
                    for k in range(K):
                        xs = x_ref[b, :, pl.ds(c0 + (k - pad), chunk)]
                        acc = acc + jnp.dot(
                            w_ref[k], xs, preferred_element_type=jnp.float32)
                    o_ref[b, :, pl.ds(c0, chunk)] = (acc + bias).astype(o_ref.dtype)
                    return carry
                lax.fori_loop(lo_int, hi_int, interior_chunk, 0)


def _interior_chunk_range(L, L_out, K, pad, chunk):
    """Static range [lo, hi) of chunk indices needing no edge handling."""
    n_chunks = -(-L_out // chunk)

    def is_interior(ci):
        c0 = ci * chunk
        if c0 + chunk > L_out:
            return False
        for k in range(K):
            s = c0 + k - pad
            if s < 0 or s + chunk > L:
                return False
        return True

    flags = [is_interior(ci) for ci in range(n_chunks)]
    lo = 0
    while lo < n_chunks and not flags[lo]:
        lo += 1
    hi = lo
    while hi < n_chunks and flags[hi]:
        hi += 1
    return lo, hi


def _target_params():
    """(num_tensorcores, vmem_limit_bytes_or_None, per-step VMEM budget)."""
    kind = ""
    try:
        kind = jax.devices()[0].device_kind.lower()
    except Exception:
        pass
    if "v7" in kind:
        # 2 TCs/chip, 64 MiB VMEM -> smaller blocks, explicit limit.
        return 2, 48 * 1024 * 1024, 20 * 1024 * 1024
    if "v5" in kind or "v6" in kind:
        # Single TC, 128 MiB physical VMEM; v5e's default scoped limit is only
        # 16 MiB so the explicit limit is required once blocks are raised.
        return 1, 64 * 1024 * 1024, 32 * 1024 * 1024
    # Unknown chip: keep the compiler defaults, stay conservative.
    return 1, None, 12 * 1024 * 1024


def _pick_batch_tile(N, C_in, C_out, L, L_out, itemsize, step_budget_bytes,
                     cores, max_unroll=16):
    """Batch elements per grid step: as large as the VMEM budget allows
    (amortizes the ~0.35us per-step overhead), capped for the static unroll,
    but keeping >= `cores` grid steps when multiple TensorCores exist."""
    per_batch = 2 * (C_in * L + C_out * L_out) * itemsize  # double-buffered io
    cap = max(1, step_budget_bytes // max(1, per_batch))
    target = min(N, cap, max_unroll)
    if cores > 1 and N >= cores:
        target = min(target, max(1, N // cores))
    target = max(1, target)
    for bt in range(target, 0, -1):
        if N % bt == 0:
            return bt
    return 1


def conv_transpose_neighbor(x_ncl, weight, bias_vec, padding):
    """x_ncl: (N, C_in, L); weight: (C_in, C_out, K); bias_vec: (C_out,).

    Returns conv_transpose1d(x, weight, padding=padding) + bias, NCL layout.
    """
    N, C_in, L = x_ncl.shape
    wc_in, C_out, K = weight.shape
    assert wc_in == C_in, (wc_in, C_in)

    L_out = L + K - 1 - 2 * padding
    assert L_out >= 1, "output length must be positive"
    pad = K - 1 - padding  # tap-k output offset; may be any sign, clipped below

    # Tap flip + channel transpose: w3[k, co, ci] = weight[ci, co, K-1-k].
    w3 = jnp.transpose(weight[:, :, ::-1], (2, 1, 0))
    bias2 = bias_vec.reshape(C_out, 1).astype(jnp.float32)

    chunk = 512 if max(C_in, C_out) <= 32 else 128
    interior_run = _interior_chunk_range(L, L_out, K, pad, chunk)

    cores, vmem_limit, step_budget = _target_params()
    itemsize = jnp.dtype(x_ncl.dtype).itemsize
    B_TILE = _pick_batch_tile(N, C_in, C_out, L, L_out, itemsize,
                              step_budget, cores)
    grid = (N // B_TILE,)

    kernel = functools.partial(
        _conv_transpose1d_kernel, K=K, pad=pad, L=L, L_out=L_out,
        chunk=chunk, interior_run=interior_run)

    return pl.pallas_call(
        kernel,
        out_shape=jax.ShapeDtypeStruct((N, C_out, L_out), x_ncl.dtype),
        grid_spec=pltpu.PrefetchScalarGridSpec(
            num_scalar_prefetch=0,
            grid=grid,
            in_specs=[
                pl.BlockSpec((B_TILE, C_in, L), lambda n: (n, 0, 0)),
                pl.BlockSpec((K, C_out, C_in), lambda n: (0, 0, 0)),
                pl.BlockSpec((C_out, 1), lambda n: (0, 0)),
            ],
            out_specs=pl.BlockSpec((B_TILE, C_out, L_out),
                                   lambda n: (n, 0, 0)),
        ),
        compiler_params=pltpu.CompilerParams(
            dimension_semantics=("parallel",),
            vmem_limit_bytes=vmem_limit),
    )(x_ncl, w3, bias2)


def _reference_numpy(x, weight, bias, padding):
    # Direct transliteration of conv_transpose1d (stride=1, dilation=1).
    x = np.asarray(x, np.float64)
    w = np.asarray(weight, np.float64)
    N, C_in, L = x.shape
    _, C_out, K = w.shape
    L_full = L + K - 1
    out = np.zeros((N, C_out, L_full), np.float64)
    for t in range(L):
        for k in range(K):
            # out[:, co, t+k] += sum_ci x[:, ci, t] * w[ci, co, k]
            out[:, :, t + k] += np.einsum("nc,cd->nd", x[:, :, t], w[:, :, k])
    out = out[:, :, padding:L_full - padding]
    out = out + np.asarray(bias, np.float64).reshape(1, C_out, 1)
    return out.astype(np.float32)


if __name__ == "__main__":
    key = jax.random.PRNGKey(0)

    # (input_dim, output_dim, kernel_size, padding, N, L)
    cases = [
        (8, 8, 3, 1, 2, 16),     # module demo regime (L_out < 128)
        (8, 8, 5, 1, 4, 530),    # ragged 2-chunk path, asymmetric edge taps
        (8, 8, 3, 1, 2, 6000),   # long L: exercises the fori interior-chunk path
    ]

    for idx, (input_dim, output_dim, K, padding, N, L) in enumerate(cases):
        C_in, C_out = output_dim, input_dim   # conv_transpose naming (see header)
        key, kx, kw = jax.random.split(key, 3)

        # Deterministic xavier_uniform on "param" (shape (output_dim, input_dim, K)).
        fan_in = input_dim * K
        fan_out = output_dim * K
        bound = float(np.sqrt(6.0 / (fan_in + fan_out)))
        weight = jax.random.uniform(
            kw, (C_in, C_out, K), jnp.float32, minval=-bound, maxval=bound)
        # param_bias is constant-initialised to 0.0 (shape (1, output_dim, 1)).
        bias_vec = jnp.zeros((C_out,), jnp.float32)

        x = jax.random.normal(kx, (N, C_in, L), jnp.float32)

        out = conv_transpose_neighbor(x, weight, bias_vec, padding)
        out = jax.block_until_ready(out)

        ref = _reference_numpy(x, weight, bias_vec, padding)
        assert out.shape == ref.shape, (idx, out.shape, ref.shape)
        np.testing.assert_allclose(np.asarray(out), ref, rtol=1e-5, atol=1e-5)

    print("KERNEL_OK")
</pallas_src>

<mosaic_0001>
module attributes {stable_mosaic.version = 11 : i64} {
  func.func @_conv_transpose1d_kernel(%arg0: i32, %arg1: memref<2x8x16xf32, #tpu.memory_space<vmem>>, %arg2: memref<3x8x8xf32, #tpu.memory_space<vmem>>, %arg3: memref<8x1xf32, #tpu.memory_space<vmem>>, %arg4: memref<2x8x16xf32, #tpu.memory_space<vmem>>) attributes {dimension_semantics = [#tpu.dimension_semantics<parallel>], iteration_bounds = array<i64: 1>, scalar_prefetch = 0 : i64, scratch_operands = 0 : i64, tpu.core_type = #tpu.core_type<tc>, window_params = [{transform_indices = @transform_0, window_bounds = array<i64: 2, 8, 16>}, {pipeline_mode = #tpu.pipeline_mode<synchronous>, transform_indices = @transform_1, window_bounds = array<i64: 3, 8, 8>}, {pipeline_mode = #tpu.pipeline_mode<synchronous>, transform_indices = @transform_2, window_bounds = array<i64: 8, 1>}, {transform_indices = @transform_3, window_bounds = array<i64: 2, 8, 16>}]} {
    %c0 = arith.constant 0 : index
    %c0_0 = arith.constant 0 : index
    %0 = vector.load %arg3[%c0, %c0_0] : memref<8x1xf32, #tpu.memory_space<vmem>>, vector<8x1xf32>
    %cst = arith.constant 0.000000e+00 : f32
    %1 = vector.broadcast %cst : f32 to vector<8x16xf32>
    %c0_1 = arith.constant 0 : index
    %c0_2 = arith.constant 0 : index
    %c0_3 = arith.constant 0 : index
    %2 = vector.load %arg1[%c0_1, %c0_2, %c0_3] : memref<2x8x16xf32, #tpu.memory_space<vmem>>, vector<1x8x15xf32>
    %3 = vector.shape_cast %2 : vector<1x8x15xf32> to vector<8x15xf32>
    %cst_4 = arith.constant 0.000000e+00 : f32
    %4 = vector.broadcast %cst_4 : f32 to vector<8x1xf32>
    %5 = tpu.concatenate %4, %3 in 1 : vector<8x1xf32>, vector<8x15xf32> -> vector<8x16xf32>
    %c0_5 = arith.constant 0 : index
    %c0_6 = arith.constant 0 : index
    %c0_7 = arith.constant 0 : index
    %6 = vector.load %arg2[%c0_5, %c0_6, %c0_7] : memref<3x8x8xf32, #tpu.memory_space<vmem>>, vector<1x8x8xf32>
    %7 = vector.shape_cast %6 : vector<1x8x8xf32> to vector<8x8xf32>
    %cst_8 = arith.constant dense<0.000000e+00> : vector<8x16xf32>
    %8 = tpu.matmul %7, %5, %cst_8 {dimension_numbers = #tpu.dot_dimension_numbers<[1], [0], [0], [1], [0, 0, 1, 1], [], []>} : vector<8x8xf32>, vector<8x16xf32>, vector<8x16xf32> -> vector<8x16xf32>
    %9 = arith.addf %1, %8 : vector<8x16xf32>
    %c0_9 = arith.constant 0 : index
    %c0_10 = arith.constant 0 : index
    %c0_11 = arith.constant 0 : index
    %10 = vector.load %arg1[%c0_9, %c0_10, %c0_11] : memref<2x8x16xf32, #tpu.memory_space<vmem>>, vector<1x8x16xf32>
    %11 = vector.shape_cast %10 : vector<1x8x16xf32> to vector<8x16xf32>
    %c1 = arith.constant 1 : index
    %c0_12 = arith.constant 0 : index
    %c0_13 = arith.constant 0 : index
    %12 = vector.load %arg2[%c1, %c0_12, %c0_13] : memref<3x8x8xf32, #tpu.memory_space<vmem>>, vector<1x8x8xf32>
    %13 = vector.shape_cast %12 : vector<1x8x8xf32> to vector<8x8xf32>
    %cst_14 = arith.constant dense<0.000000e+00> : vector<8x16xf32>
    %14 = tpu.matmul %13, %11, %cst_14 {dimension_numbers = #tpu.dot_dimension_numbers<[1], [0], [0], [1], [0, 0, 1, 1], [], []>} : vector<8x8xf32>, vector<8x16xf32>, vector<8x16xf32> -> vector<8x16xf32>
    %15 = arith.addf %9, %14 : vector<8x16xf32>
    %c0_15 = arith.constant 0 : index
    %c0_16 = arith.constant 0 : index
    %c1_17 = arith.constant 1 : index
    %16 = vector.load %arg1[%c0_15, %c0_16, %c1_17] : memref<2x8x16xf32, #tpu.memory_space<vmem>>, vector<1x8x15xf32>
    %17 = vector.shape_cast %16 : vector<1x8x15xf32> to vector<8x15xf32>
    %cst_18 = arith.constant 0.000000e+00 : f32
    %18 = vector.broadcast %cst_18 : f32 to vector<8x1xf32>
    %19 = tpu.concatenate %17, %18 in 1 : vector<8x15xf32>, vector<8x1xf32> -> vector<8x16xf32>
    %c2 = arith.constant 2 : index
    %c0_19 = arith.constant 0 : index
    %c0_20 = arith.constant 0 : index
    %20 = vector.load %arg2[%c2, %c0_19, %c0_20] : memref<3x8x8xf32, #tpu.memory_space<vmem>>, vector<1x8x8xf32>
    %21 = vector.shape_cast %20 : vector<1x8x8xf32> to vector<8x8xf32>
    %cst_21 = arith.constant dense<0.000000e+00> : vector<8x16xf32>
    %22 = tpu.matmul %21, %19, %cst_21 {dimension_numbers = #tpu.dot_dimension_numbers<[1], [0], [0], [1], [0, 0, 1, 1], [], []>} : vector<8x8xf32>, vector<8x16xf32>, vector<8x16xf32> -> vector<8x16xf32>
    %23 = arith.addf %15, %22 : vector<8x16xf32>
    %24 = vector.broadcast %0 : vector<8x1xf32> to vector<8x16xf32>
    %25 = arith.addf %23, %24 : vector<8x16xf32>
    %c0_22 = arith.constant 0 : index
    %c0_23 = arith.constant 0 : index
    %c0_24 = arith.constant 0 : index
    %26 = vector.load %arg4[%c0_22, %c0_23, %c0_24] : memref<2x8x16xf32, #tpu.memory_space<vmem>>, vector<1x8x16xf32>
    %27 = vector.shape_cast %26 : vector<1x8x16xf32> to vector<8x16xf32>
    %28 = vector.shape_cast %25 : vector<8x16xf32> to vector<1x8x16xf32>
    tpu.vector_store %arg4[%c0_22, %c0_23, %c0_24], %28 {strides = array<i32>} : memref<2x8x16xf32, #tpu.memory_space<vmem>>, vector<1x8x16xf32>,
    %cst_25 = arith.constant 0.000000e+00 : f32
    %29 = vector.broadcast %cst_25 : f32 to vector<8x16xf32>
    %c1_26 = arith.constant 1 : index
    %c0_27 = arith.constant 0 : index
    %c0_28 = arith.constant 0 : index
    %30 = vector.load %arg1[%c1_26, %c0_27, %c0_28] : memref<2x8x16xf32, #tpu.memory_space<vmem>>, vector<1x8x15xf32>
    %31 = vector.shape_cast %30 : vector<1x8x15xf32> to vector<8x15xf32>
    %cst_29 = arith.constant 0.000000e+00 : f32
    %32 = vector.broadcast %cst_29 : f32 to vector<8x1xf32>
    %33 = tpu.concatenate %32, %31 in 1 : vector<8x1xf32>, vector<8x15xf32> -> vector<8x16xf32>
    %c0_30 = arith.constant 0 : index
    %c0_31 = arith.constant 0 : index
    %c0_32 = arith.constant 0 : index
    %34 = vector.load %arg2[%c0_30, %c0_31, %c0_32] : memref<3x8x8xf32, #tpu.memory_space<vmem>>, vector<1x8x8xf32>
    %35 = vector.shape_cast %34 : vector<1x8x8xf32> to vector<8x8xf32>
    %cst_33 = arith.constant dense<0.000000e+00> : vector<8x16xf32>
    %36 = tpu.matmul %35, %33, %cst_33 {dimension_numbers = #tpu.dot_dimension_numbers<[1], [0], [0], [1], [0, 0, 1, 1], [], []>} : vector<8x8xf32>, vector<8x16xf32>, vector<8x16xf32> -> vector<8x16xf32>
    %37 = arith.addf %29, %36 : vector<8x16xf32>
    %c1_34 = arith.constant 1 : index
    %c0_35 = arith.constant 0 : index
    %c0_36 = arith.constant 0 : index
    %38 = vector.load %arg1[%c1_34, %c0_35, %c0_36] : memref<2x8x16xf32, #tpu.memory_space<vmem>>, vector<1x8x16xf32>
    %39 = vector.shape_cast %38 : vector<1x8x16xf32> to vector<8x16xf32>
    %c1_37 = arith.constant 1 : index
    %c0_38 = arith.constant 0 : index
    %c0_39 = arith.constant 0 : index
    %40 = vector.load %arg2[%c1_37, %c0_38, %c0_39] : memref<3x8x8xf32, #tpu.memory_space<vmem>>, vector<1x8x8xf32>
    %41 = vector.shape_cast %40 : vector<1x8x8xf32> to vector<8x8xf32>
    %cst_40 = arith.constant dense<0.000000e+00> : vector<8x16xf32>
    %42 = tpu.matmul %41, %39, %cst_40 {dimension_numbers = #tpu.dot_dimension_numbers<[1], [0], [0], [1], [0, 0, 1, 1], [], []>} : vector<8x8xf32>, vector<8x16xf32>, vector<8x16xf32> -> vector<8x16xf32>
    %43 = arith.addf %37, %42 : vector<8x16xf32>
    %c1_41 = arith.constant 1 : index
    %c0_42 = arith.constant 0 : index
    %c1_43 = arith.constant 1 : index
    %44 = vector.load %arg1[%c1_41, %c0_42, %c1_43] : memref<2x8x16xf32, #tpu.memory_space<vmem>>, vector<1x8x15xf32>
    %45 = vector.shape_cast %44 : vector<1x8x15xf32> to vector<8x15xf32>
    %cst_44 = arith.constant 0.000000e+00 : f32
    %46 = vector.broadcast %cst_44 : f32 to vector<8x1xf32>
    %47 = tpu.concatenate %45, %46 in 1 : vector<8x15xf32>, vector<8x1xf32> -> vector<8x16xf32>
    %c2_45 = arith.constant 2 : index
    %c0_46 = arith.constant 0 : index
    %c0_47 = arith.constant 0 : index
    %48 = vector.load %arg2[%c2_45, %c0_46, %c0_47] : memref<3x8x8xf32, #tpu.memory_space<vmem>>, vector<1x8x8xf32>
    %49 = vector.shape_cast %48 : vector<1x8x8xf32> to vector<8x8xf32>
    %cst_48 = arith.constant dense<0.000000e+00> : vector<8x16xf32>
    %50 = tpu.matmul %49, %47, %cst_48 {dimension_numbers = #tpu.dot_dimension_numbers<[1], [0], [0], [1], [0, 0, 1, 1], [], []>} : vector<8x8xf32>, vector<8x16xf32>, vector<8x16xf32> -> vector<8x16xf32>
    %51 = arith.addf %43, %50 : vector<8x16xf32>
    %52 = vector.broadcast %0 : vector<8x1xf32> to vector<8x16xf32>
    %53 = arith.addf %51, %52 : vector<8x16xf32>
    %c1_49 = arith.constant 1 : index
    %c0_50 = arith.constant 0 : index
    %c0_51 = arith.constant 0 : index
    %54 = vector.load %arg4[%c1_49, %c0_50, %c0_51] : memref<2x8x16xf32, #tpu.memory_space<vmem>>, vector<1x8x16xf32>
    %55 = vector.shape_cast %54 : vector<1x8x16xf32> to vector<8x16xf32>
    %56 = vector.shape_cast %53 : vector<8x16xf32> to vector<1x8x16xf32>
    tpu.vector_store %arg4[%c1_49, %c0_50, %c0_51], %56 {strides = array<i32>} : memref<2x8x16xf32, #tpu.memory_space<vmem>>, vector<1x8x16xf32>,
    return
  }
  func.func @transform_0(%arg0: i32) -> (i32, i32, i32) {
    %c0_i32 = arith.constant 0 : i32
    %c0_i32_0 = arith.constant 0 : i32
    %c0_i32_1 = arith.constant 0 : i32
    return %arg0, %c0_i32, %c0_i32_0 : i32, i32, i32
  }
  func.func @transform_1(%arg0: i32) -> (i32, i32, i32) {
    %c0_i32 = arith.constant 0 : i32
    %c0_i32_0 = arith.constant 0 : i32
    %c0_i32_1 = arith.constant 0 : i32
    %c0_i32_2 = arith.constant 0 : i32
    return %c0_i32, %c0_i32_0, %c0_i32_1 : i32, i32, i32
  }
  func.func @transform_2(%arg0: i32) -> (i32, i32) {
    %c0_i32 = arith.constant 0 : i32
    %c0_i32_0 = arith.constant 0 : i32
    %c0_i32_1 = arith.constant 0 : i32
    return %c0_i32, %c0_i32_0 : i32, i32
  }
  func.func @transform_3(%arg0: i32) -> (i32, i32, i32) {
    %c0_i32 = arith.constant 0 : i32
    %c0_i32_0 = arith.constant 0 : i32
    %c0_i32_1 = arith.constant 0 : i32
    return %arg0, %c0_i32, %c0_i32_0 : i32, i32, i32
  }
}

</mosaic_0001>

<llo_original>
// kernel: tpu_custom_call.1
$region0: #{tpu_custom_call.1}
  #allocation0 [shape = 'u32[]', space=smem, size = 0x4, offset = 0x4, fixed_abs, tag = 'smem constant byte address 0x4 - core index']
  #allocation1 [shape = 'u32[72,128]{1,0:T(1,128)}', space=vmem, size = 0x9000, scoped, tag = 'internal scratch']
  %s0 = inlined_call_operand.hbm [shape: f32[2,8,16], index: 0, kind: input, shape index: {}]
  %s1 = inlined_call_operand.hbm [shape: f32[3,8,8], index: 1, kind: input, shape index: {}]
  %s2 = inlined_call_operand.vmem [shape: f32[8,1], index: 2, kind: input, shape index: {}]
  %s3 = inlined_call_operand.hbm [shape: f32[2,8,16], index: 3, kind: output, shape index: {}]
  %s4 = sld [smem:[#allocation0]]
  $region30: #{tpu_custom_call.1} parent=0
    _
  %s6 = ssub.s32 1, %s4
  %s7 = scalar_select 0, %s6, %s4
  $region1: #{tpu_custom_call.1} parent=0
    #allocation2 [shape = 'u8[8192]{0}', space=vmem, size = 0x2000, scoped, tag = 'input window, operand 0, single buffered']
    #allocation3 [shape = 's32[1]{0}', space=sflag, size = 0x4, scoped, tag = 'scoped memory for tpu_custom_call.1']
    #allocation4 [shape = 's32[1]{0}', space=sflag, size = 0x4, scoped, tag = 'scoped memory for tpu_custom_call.1']
    #allocation5 [shape = 'u8[12288]{0}', space=vmem, size = 0x3000, scoped, tag = 'input window, operand 1, single buffered']
    #allocation6 [shape = 's32[1]{0}', space=sflag, size = 0x4, scoped, tag = 'scoped memory for tpu_custom_call.1']
    #allocation7 [shape = 'u8[8192]{0}', space=vmem, size = 0x2000, scoped, tag = 'output window, operand 0, single buffered']
    %8 = vsyncpa [#allocation3], 0
    %9 = vsyncpa [#allocation6], 0
    %10 = vsyncpa [#allocation4], 0
    // Predicated region
    $region2: #{tpu_custom_call.1} parent=1 // pred_check
      _
    $region3: #{tpu_custom_call.1} parent=1 // pred_check_branch
      %12 = sbr.rel (0) target = $region5
    $region4: #{tpu_custom_call.1} parent=1 // pred_region
      %14 = vsyncadd [#allocation3], 0
      %s15 = sshll.u32 %s0, 4
      %s16 = int_to_ptr.hbm [resolvable:$true] %s15
      %s17 = sshll.u32 [#allocation2], 4
      %s18 = int_to_ptr.vmem [resolvable:$true] %s17
      %23 = dma.hbm_to_vmem [thread:$0]  %s16, 256, %s18, [#allocation3], 128, 128, 8
    $region5: #{tpu_custom_call.1} parent=1 // pred_fallthru
      _
    // Predicated region
    $region6: #{tpu_custom_call.1} parent=1 // pred_check
      _
    $region7: #{tpu_custom_call.1} parent=1 // pred_check_branch
      %25 = sbr.rel (0) target = $region9
    $region8: #{tpu_custom_call.1} parent=1 // pred_region
      %27 = vsyncadd [#allocation6], 0
      %s28 = sshll.u32 %s1, 4
      %s29 = int_to_ptr.hbm [resolvable:$true] %s28
      %s30 = sshll.u32 [#allocation5], 4
      %s31 = int_to_ptr.vmem [resolvable:$true] %s30
      %36 = dma.hbm_to_vmem [thread:$0]  %s29, 384, %s31, [#allocation6], 128, 128, 8
    $region9: #{tpu_custom_call.1} parent=1 // pred_fallthru
      _
    // Predicated region
    $region10: #{tpu_custom_call.1} parent=1 // pred_check
      _
    $region11: #{tpu_custom_call.1} parent=1 // pred_check_branch
      %38 = sbr.rel (0) target = $region13
    $region12: #{tpu_custom_call.1} parent=1 // pred_region
      _
    $region13: #{tpu_custom_call.1} parent=1 // pred_fallthru
      _
    // Predicated region
    $region14: #{tpu_custom_call.1} parent=1 // pred_check
      _
    $region15: #{tpu_custom_call.1} parent=1 // pred_check_branch
      %40 = sbr.rel (0) target = $region17
    $region16: #{tpu_custom_call.1} parent=1 // pred_region
      %42 = dma.done [#allocation3], 256
    $region17: #{tpu_custom_call.1} parent=1 // pred_fallthru
      _
    // Predicated region
    $region18: #{tpu_custom_call.1} parent=1 // pred_check
      _
    $region19: #{tpu_custom_call.1} parent=1 // pred_check_branch
      %44 = sbr.rel (0) target = $region21
    $region20: #{tpu_custom_call.1} parent=1 // pred_region
      %46 = dma.done [#allocation6], 384
    $region21: #{tpu_custom_call.1} parent=1 // pred_fallthru
      _
    %v47 = vld [vmem:[%s2] sm:$0xff]
    %v48 = vld [vmem:[#allocation2] sm:$0xff]
    %50 = vrot.lane.b32.xlu0 %v48, 1
    %v51 = vpop.permute.xlu0 %50
    %vm53 = vcmask 7168
    %v54 = vsel %vm53, 0.0, %v51
    %v55 = vld [vmem:[#allocation5] sm:$0xff]
    %s56 = scalar_lea.vmem [#allocation5], 8
    %v57 = vld [vmem:[%s56] sm:$0xff]
    %vm58 = vcmask 64512
    %v60 = vsel %vm58, %v57, 0
    %62 = vmatpush.msra.mxu0 0.0
    %63 = vmatpush.msra.mxu0 0.0
    %64 = vmatpush.msra.mxu0 0.0
    %65 = vmatpush.msra.mxu0 0.0
    %66 = vmatpush.msra.mxu0 0.0
    %67 = vmatpush.msra.mxu0 0.0
    %68 = vmatpush.msra.mxu0 0.0
    %69 = vmatpush.msra.mxu0 0.0
    %70 = vmatpush.msra.mxu0 0.0
    %71 = vmatpush.msra.mxu0 0.0
    %72 = vmatpush.msra.mxu0 0.0
    %73 = vmatpush.msra.mxu0 0.0
    %74 = vmatpush.msra.mxu0 0.0
    %75 = vmatpush.msra.mxu0 0.0
    %76 = vmatpush.msra.mxu0 0.0
    %77 = vmatpush.msra.mxu0 %v48
    %78 = vmatmul.f32.gmra.mxu0 %v60
    %v79 = vpop.f32.mrf.mxu0
    %v80 = vadd.f32 0.0, %v79
    %81 = vdwg.mxu0
    %v83 = vsel %vm58, %v55, 0
    %85 = vmatpush.msra.mxu0 0.0
    %86 = vmatpush.msra.mxu0 0.0
    %87 = vmatpush.msra.mxu0 0.0
    %88 = vmatpush.msra.mxu0 0.0
    %89 = vmatpush.msra.mxu0 0.0
    %90 = vmatpush.msra.mxu0 0.0
    %91 = vmatpush.msra.mxu0 0.0
    %92 = vmatpush.msra.mxu0 0.0
    %93 = vmatpush.msra.mxu0 0.0
    %94 = vmatpush.msra.mxu0 0.0
    %95 = vmatpush.msra.mxu0 0.0
    %96 = vmatpush.msra.mxu0 0.0
    %97 = vmatpush.msra.mxu0 0.0
    %98 = vmatpush.msra.mxu0 0.0
    %99 = vmatpush.msra.mxu0 0.0
    %100 = vmatpush.msra.mxu0 %v54
    %101 = vmatmul.f32.gmra.mxu0 %v83
    %v102 = vpop.f32.mrf.mxu0
    %v103 = vadd.f32 %v80, %v102
    %104 = vdwg.mxu0
    %105 = vrot.lane.b32.xlu0 %v48, 127
    %v106 = vpop.permute.xlu0 %105
    %vm108 = vcmask 121856
    %v109 = vsel %vm108, %v106, 0.0
    %s110 = scalar_lea.vmem [#allocation5], 16
    %v111 = vld [vmem:[%s110] sm:$0xff]
    %v113 = vsel %vm58, %v111, 0
    %115 = vmatpush.msra.mxu0 0.0
    %116 = vmatpush.msra.mxu0 0.0
    %117 = vmatpush.msra.mxu0 0.0
    %118 = vmatpush.msra.mxu0 0.0
    %119 = vmatpush.msra.mxu0 0.0
    %120 = vmatpush.msra.mxu0 0.0
    %121 = vmatpush.msra.mxu0 0.0
    %122 = vmatpush.msra.mxu0 0.0
    %123 = vmatpush.msra.mxu0 0.0
    %124 = vmatpush.msra.mxu0 0.0
    %125 = vmatpush.msra.mxu0 0.0
    %126 = vmatpush.msra.mxu0 0.0
    %127 = vmatpush.msra.mxu0 0.0
    %128 = vmatpush.msra.mxu0 0.0
    %129 = vmatpush.msra.mxu0 0.0
    %130 = vmatpush.msra.mxu0 %v109
    %131 = vmatmul.f32.gmra.mxu0 %v113
    %v132 = vpop.f32.mrf.mxu0
    %v133 = vadd.f32 0.0, %v132
    %134 = vdwg.mxu0
    %v135 = vadd.f32 %v103, %v133
    %137 = vset.pattern.permute.xlu0 0
    %138 = vperm.xlu0 %137, %v47
    %v139 = vpop.permute.xlu0 %138
    %v141 = vadd.f32 %v135, %v139
    %vm142 = vcmask 130048
    %143 = vst.msk [vmem:[#allocation7] sm:$0xff] %vm142, %v141
    %s144 = scalar_lea.vmem [#allocation2], 8
    %v145 = vld [vmem:[%s144] sm:$0xff]
    %147 = vrot.lane.b32.xlu0 %v145, 1
    %v148 = vpop.permute.xlu0 %147
    %v150 = vsel %vm53, 0.0, %v148
    %v151 = vld [vmem:[#allocation5] sm:$0xff]
    %v152 = vld [vmem:[%s56] sm:$0xff]
    %v154 = vsel %vm58, %v152, 0
    %156 = vmatpush.msra.mxu0 0.0
    %157 = vmatpush.msra.mxu0 0.0
    %158 = vmatpush.msra.mxu0 0.0
    %159 = vmatpush.msra.mxu0 0.0
    %160 = vmatpush.msra.mxu0 0.0
    %161 = vmatpush.msra.mxu0 0.0
    %162 = vmatpush.msra.mxu0 0.0
    %163 = vmatpush.msra.mxu0 0.0
    %164 = vmatpush.msra.mxu0 0.0
    %165 = vmatpush.msra.mxu0 0.0
    %166 = vmatpush.msra.mxu0 0.0
    %167 = vmatpush.msra.mxu0 0.0
    %168 = vmatpush.msra.mxu0 0.0
    %169 = vmatpush.msra.mxu0 0.0
    %170 = vmatpush.msra.mxu0 0.0
    %171 = vmatpush.msra.mxu0 %v145
    %172 = vmatmul.f32.gmra.mxu0 %v154
    %v173 = vpop.f32.mrf.mxu0
    %v174 = vadd.f32 0.0, %v173
    %175 = vdwg.mxu0
    %v177 = vsel %vm58, %v151, 0
    %179 = vmatpush.msra.mxu0 0.0
    %180 = vmatpush.msra.mxu0 0.0
    %181 = vmatpush.msra.mxu0 0.0
    %182 = vmatpush.msra.mxu0 0.0
    %183 = vmatpush.msra.mxu0 0.0
    %184 = vmatpush.msra.mxu0 0.0
    %185 = vmatpush.msra.mxu0 0.0
    %186 = vmatpush.msra.mxu0 0.0
    %187 = vmatpush.msra.mxu0 0.0
    %188 = vmatpush.msra.mxu0 0.0
    %189 = vmatpush.msra.mxu0 0.0
    %190 = vmatpush.msra.mxu0 0.0
    %191 = vmatpush.msra.mxu0 0.0
    %192 = vmatpush.msra.mxu0 0.0
    %193 = vmatpush.msra.mxu0 0.0
    %194 = vmatpush.msra.mxu0 %v150
    %195 = vmatmul.f32.gmra.mxu0 %v177
    %v196 = vpop.f32.mrf.mxu0
    %v197 = vadd.f32 %v174, %v196
    %198 = vdwg.mxu0
    %199 = vrot.lane.b32.xlu0 %v145, 127
    %v200 = vpop.permute.xlu0 %199
    %v202 = vsel %vm108, %v200, 0.0
    %v203 = vld [vmem:[%s110] sm:$0xff]
    %v205 = vsel %vm58, %v203, 0
    %207 = vmatpush.msra.mxu0 0.0
    %208 = vmatpush.msra.mxu0 0.0
    %209 = vmatpush.msra.mxu0 0.0
    %210 = vmatpush.msra.mxu0 0.0
    %211 = vmatpush.msra.mxu0 0.0
    %212 = vmatpush.msra.mxu0 0.0
    %213 = vmatpush.msra.mxu0 0.0
    %214 = vmatpush.msra.mxu0 0.0
    %215 = vmatpush.msra.mxu0 0.0
    %216 = vmatpush.msra.mxu0 0.0
    %217 = vmatpush.msra.mxu0 0.0
    %218 = vmatpush.msra.mxu0 0.0
    %219 = vmatpush.msra.mxu0 0.0
    %220 = vmatpush.msra.mxu0 0.0
    %221 = vmatpush.msra.mxu0 0.0
    %222 = vmatpush.msra.mxu0 %v202
    %223 = vmatmul.f32.gmra.mxu0 %v205
    %v224 = vpop.f32.mrf.mxu0
    %v225 = vadd.f32 0.0, %v224
    %226 = vdwg.mxu0
    %v227 = vadd.f32 %v197, %v225
    %v228 = vadd.f32 %v227, %v139
    %s229 = scalar_lea.vmem [#allocation7], 8
    %230 = vst.msk [vmem:[%s229] sm:$0xff] %vm142, %v228
    // Predicated region
    $region22: #{tpu_custom_call.1} parent=1 // pred_check
      _
    $region23: #{tpu_custom_call.1} parent=1 // pred_check_branch
      %232 = sbr.rel (0) target = $region25
    $region24: #{tpu_custom_call.1} parent=1 // pred_region
      %234 = vsyncadd [#allocation4], 0
      %s235 = sshll.u32 [#allocation7], 4
      %s236 = int_to_ptr.vmem [resolvable:$true] %s235
      %s237 = sshll.u32 %s3, 4
      %s238 = int_to_ptr.hbm [resolvable:$true] %s237
      %243 = dma.vmem_to_hbm [thread:$0]  %s236, 256, %s238, [#allocation4], 128, 128, 8
    $region25: #{tpu_custom_call.1} parent=1 // pred_fallthru
      _
    // Predicated region
    $region26: #{tpu_custom_call.1} parent=1 // pred_check
      _
    $region27: #{tpu_custom_call.1} parent=1 // pred_check_branch
      %245 = sbr.rel (0) target = $region29
    $region28: #{tpu_custom_call.1} parent=1 // pred_region
      %247 = dma.done [#allocation4], 256
    $region29: #{tpu_custom_call.1} parent=1 // pred_fallthru
      _
    %248 = vsyncpa [#allocation3], 1
    %249 = vsyncpa [#allocation6], 1
    %250 = vsyncpa [#allocation4], 1

</llo_original>
